<compile_context>
chip_gen: v7x
topology: tpu7x:2x2x1
jax: 0.10.0
libtpu: 0.0.40
codegen_flags: <defaults>
</compile_context>

<pallas_src>
import functools

import jax
import jax.numpy as jnp
from jax.experimental import pallas as pl
from jax.experimental.pallas import tpu as pltpu


def _round_up(x, m):
    return ((x + m - 1) // m) * m


def _classification_kernel(x_ref, w_ref, b_ref, o_ref):
    # x: [TM, E] bf16 (row tile), w: [E, C_pad] bf16 (resident),
    # b: [1, C_pad] f32 (resident), o: [TM, C_pad] f32.
    x = x_ref[...]
    w = w_ref[...]

    # Linear layer on the MXU, f32 accumulation; bias add in f32.
    logits = jnp.dot(x, w, preferred_element_type=jnp.float32) + b_ref[...]

    # Numerically stable log_softmax along the class axis (all f32).
    # Padded classes carry bias=-1e30 -> exp()==0, so they never contribute.
    m = jnp.max(logits, axis=1, keepdims=True)
    z = logits - m
    lse = jnp.log(jnp.sum(jnp.exp(z), axis=1, keepdims=True))
    o_ref[...] = (z - lse).astype(o_ref.dtype)


@functools.partial(jax.jit, static_argnames=("block_rows",))
def classification_forward(embeds, weight, bias, *, block_rows=256):
    """embeds: [N, E] f32, weight: [E, C] f32, bias: [C] f32 -> [N, C] f32."""
    N, E = embeds.shape
    C = weight.shape[1]

    # --- lane-dense class dim: pad C up to a multiple of 128 -----------------
    C_pad = _round_up(C, 128)
    pad_c = C_pad - C
    w_p = jnp.pad(weight, ((0, 0), (0, pad_c))).astype(jnp.bfloat16)   # [E, C_pad]
    b_p = jnp.pad(bias, (0, pad_c), constant_values=-1e30)             # [C_pad]
    b_p = b_p.reshape(1, C_pad).astype(jnp.float32)

    # --- row tiling ----------------------------------------------------------
    TM = min(block_rows, _round_up(N, 8))
    N_pad = _round_up(N, TM)
    # Cast activations once in the wrapper (same precision path as casting in
    # the kernel, but halves the x-tile DMA bytes).
    x_p = jnp.pad(embeds, ((0, N_pad - N), (0, 0))).astype(jnp.bfloat16)  # [N_pad, E]

    grid = (N_pad // TM,)

    out = pl.pallas_call(
        _classification_kernel,
        out_shape=jax.ShapeDtypeStruct((N_pad, C_pad), jnp.float32),
        grid_spec=pltpu.PrefetchScalarGridSpec(
            num_scalar_prefetch=0,
            grid=grid,
            in_specs=[
                pl.BlockSpec((TM, E), lambda i: (i, 0)),        # row tile of x
                pl.BlockSpec((E, C_pad), lambda i: (0, 0)),     # resident weight
                pl.BlockSpec((1, C_pad), lambda i: (0, 0)),     # resident bias
            ],
            out_specs=pl.BlockSpec((TM, C_pad), lambda i: (i, 0)),
        ),
        compiler_params=pltpu.CompilerParams(
            dimension_semantics=("parallel",),                  # megacore on v7x
        ),
    )(x_p, w_p, b_p)

    return out[:N, :C]


def _xavier_uniform(key, fan_in, fan_out, shape):
    # Matches torch.nn.init.xavier_uniform_ (gain=1).
    limit = jnp.sqrt(6.0 / (fan_in + fan_out))
    return jax.random.uniform(key, shape, jnp.float32, -limit, limit)


def _reference_f32(embeds, weight, bias):
    logits = embeds @ weight + bias[None, :]
    return jax.nn.log_softmax(logits, axis=1)


def _reference_bf16_matmul(embeds, weight, bias):
    # Same precision path as the kernel: bf16 MXU operands, f32 accumulation,
    # f32 softmax.
    logits = jnp.dot(embeds.astype(jnp.bfloat16), weight.astype(jnp.bfloat16),
                     preferred_element_type=jnp.float32) + bias[None, :]
    return jax.nn.log_softmax(logits, axis=1)


if __name__ == "__main__":
    key = jax.random.PRNGKey(0)
    k_x, k_w, k_b = jax.random.split(key, 3)

    N, emb_size, num_classes = 8, 32, 16

    embeds = jax.random.normal(k_x, (N, emb_size), jnp.float32)

    # nn.Linear weight is [num_classes, emb_size], xavier-uniform initialized
    # (fan_in=emb_size, fan_out=num_classes). We store its transpose [E, C].
    w_torch_shape = _xavier_uniform(k_w, emb_size, num_classes,
                                    (num_classes, emb_size))
    weight = w_torch_shape.T  # [E, C]

    # nn.Linear bias default init: U(-1/sqrt(fan_in), 1/sqrt(fan_in))
    # (untouched by init_params since it is 1-D).
    bound = 1.0 / jnp.sqrt(jnp.float32(emb_size))
    bias = jax.random.uniform(k_b, (num_classes,), jnp.float32, -bound, bound)

    out = classification_forward(embeds, weight, bias)
    out = jax.block_until_ready(out)
    assert out.shape == (N, num_classes)

    # Exact-path reference (bf16 matmul, f32 softmax) — tight tolerance.
    ref_bf16 = _reference_bf16_matmul(embeds, weight, bias)
    assert jnp.allclose(out, ref_bf16, atol=1e-4, rtol=1e-4), \
        "mismatch vs bf16-matmul reference"

    # Full-f32 reference — loose tolerance (bf16 operand rounding).
    ref_f32 = _reference_f32(embeds, weight, bias)
    assert jnp.allclose(out, ref_f32, atol=3e-2, rtol=3e-2), \
        "mismatch vs f32 reference"

    print("KERNEL_OK")
</pallas_src>

<mosaic_0001>
module attributes {stable_mosaic.version = 11 : i64} {
  func.func @_classification_kernel(%arg0: i32, %arg1: memref<8x32xbf16, #tpu.memory_space<vmem>>, %arg2: memref<32x128xbf16, #tpu.memory_space<vmem>>, %arg3: memref<1x128xf32, #tpu.memory_space<vmem>>, %arg4: memref<8x128xf32, #tpu.memory_space<vmem>>) attributes {dimension_semantics = [#tpu.dimension_semantics<parallel>], iteration_bounds = array<i64: 1>, scalar_prefetch = 0 : i64, scratch_operands = 0 : i64, tpu.core_type = #tpu.core_type<tc>, window_params = [{transform_indices = @transform_0, window_bounds = array<i64: 8, 32>}, {pipeline_mode = #tpu.pipeline_mode<synchronous>, transform_indices = @transform_1, window_bounds = array<i64: 32, 128>}, {pipeline_mode = #tpu.pipeline_mode<synchronous>, transform_indices = @transform_2, window_bounds = array<i64: 1, 128>}, {transform_indices = @transform_3, window_bounds = array<i64: 8, 128>}]} {
    %c0 = arith.constant 0 : index
    %c0_0 = arith.constant 0 : index
    %0 = vector.load %arg1[%c0, %c0_0] : memref<8x32xbf16, #tpu.memory_space<vmem>>, vector<8x32xbf16>
    %c0_1 = arith.constant 0 : index
    %c0_2 = arith.constant 0 : index
    %1 = vector.load %arg2[%c0_1, %c0_2] : memref<32x128xbf16, #tpu.memory_space<vmem>>, vector<32x128xbf16>
    %cst = arith.constant dense<0.000000e+00> : vector<8x128xf32>
    %2 = tpu.matmul %0, %1, %cst {dimension_numbers = #tpu.dot_dimension_numbers<[1], [0], [0], [1], [0, 0, 1, 1], [], []>} : vector<8x32xbf16>, vector<32x128xbf16>, vector<8x128xf32> -> vector<8x128xf32>
    %c0_3 = arith.constant 0 : index
    %c0_4 = arith.constant 0 : index
    %3 = vector.load %arg3[%c0_3, %c0_4] : memref<1x128xf32, #tpu.memory_space<vmem>>, vector<1x128xf32>
    %4 = vector.broadcast %3 : vector<1x128xf32> to vector<8x128xf32>
    %5 = arith.addf %2, %4 : vector<8x128xf32>
    %cst_5 = arith.constant dense<0xFF800000> : vector<8xf32>
    %6 = vector.multi_reduction <maximumf>, %5, %cst_5 [1] : vector<8x128xf32> to vector<8xf32>
    %7 = vector.shape_cast %6 : vector<8xf32> to vector<8x1xf32>
    %8 = vector.broadcast %7 : vector<8x1xf32> to vector<8x128xf32>
    %9 = arith.subf %5, %8 : vector<8x128xf32>
    %10 = math.exp %9 : vector<8x128xf32>
    %cst_6 = arith.constant dense<0.000000e+00> : vector<8xf32>
    %11 = vector.multi_reduction <add>, %10, %cst_6 [1] : vector<8x128xf32> to vector<8xf32>
    %12 = vector.shape_cast %11 : vector<8xf32> to vector<8x1xf32>
    %13 = math.log %12 : vector<8x1xf32>
    %14 = vector.broadcast %13 : vector<8x1xf32> to vector<8x128xf32>
    %15 = arith.subf %9, %14 : vector<8x128xf32>
    %c0_7 = arith.constant 0 : index
    %c0_8 = arith.constant 0 : index
    %16 = vector.load %arg4[%c0_7, %c0_8] : memref<8x128xf32, #tpu.memory_space<vmem>>, vector<8x128xf32>
    tpu.vector_store %arg4[%c0_7, %c0_8], %15 {strides = array<i32>} : memref<8x128xf32, #tpu.memory_space<vmem>>, vector<8x128xf32>,
    return
  }
  func.func @transform_0(%arg0: i32) -> (i32, i32) {
    %c0_i32 = arith.constant 0 : i32
    %c0_i32_0 = arith.constant 0 : i32
    return %arg0, %c0_i32 : i32, i32
  }
  func.func @transform_1(%arg0: i32) -> (i32, i32) {
    %c0_i32 = arith.constant 0 : i32
    %c0_i32_0 = arith.constant 0 : i32
    %c0_i32_1 = arith.constant 0 : i32
    return %c0_i32, %c0_i32_0 : i32, i32
  }
  func.func @transform_2(%arg0: i32) -> (i32, i32) {
    %c0_i32 = arith.constant 0 : i32
    %c0_i32_0 = arith.constant 0 : i32
    %c0_i32_1 = arith.constant 0 : i32
    return %c0_i32, %c0_i32_0 : i32, i32
  }
  func.func @transform_3(%arg0: i32) -> (i32, i32) {
    %c0_i32 = arith.constant 0 : i32
    %c0_i32_0 = arith.constant 0 : i32
    return %arg0, %c0_i32 : i32, i32
  }
}

</mosaic_0001>

<llo_original>
// kernel: classification_forward.1
$region0: #{classification_forward.1}
  #allocation0 [shape = 'u32[]', space=smem, size = 0x4, offset = 0x4, fixed_abs, tag = 'smem constant byte address 0x4 - core index']
  #allocation1 [shape = 'u32[144,128]{1,0:T(1,128)}', space=vmem, size = 0x12000, scoped, tag = 'internal scratch']
  %s0 = inlined_call_operand.vmem [shape: bf16[8,32], index: 0, kind: input, shape index: {}]
  %s1 = inlined_call_operand.vmem [shape: bf16[32,128], index: 1, kind: input, shape index: {}]
  %s2 = inlined_call_operand.vmem [shape: f32[1,128], index: 2, kind: input, shape index: {}]
  %s3 = inlined_call_operand.hbm [shape: f32[8,128], index: 3, kind: output, shape index: {}]
  %s4 = sld [smem:[#allocation0]]
  $region22: #{classification_forward.1} parent=0
    _
  %s6 = ssub.s32 1, %s4
  %s7 = scalar_select 0, %s6, %s4
  $region1: #{classification_forward.1} parent=0
    #allocation2 [shape = 'u8[4096]{0}', space=vmem, size = 0x1000, scoped, tag = 'output window, operand 0, single buffered']
    #allocation3 [shape = 's32[1]{0}', space=sflag, size = 0x4, scoped, tag = 'scoped memory for classification_forward.1']
    %8 = vsyncpa [#allocation3], 0
    // Predicated region
    $region2: #{classification_forward.1} parent=1 // pred_check
      _
    $region3: #{classification_forward.1} parent=1 // pred_check_branch
      %10 = sbr.rel (0) target = $region5
    $region4: #{classification_forward.1} parent=1 // pred_region
      _
    $region5: #{classification_forward.1} parent=1 // pred_fallthru
      _
    // Predicated region
    $region6: #{classification_forward.1} parent=1 // pred_check
      _
    $region7: #{classification_forward.1} parent=1 // pred_check_branch
      %12 = sbr.rel (0) target = $region9
    $region8: #{classification_forward.1} parent=1 // pred_region
      _
    $region9: #{classification_forward.1} parent=1 // pred_fallthru
      _
    // Predicated region
    $region10: #{classification_forward.1} parent=1 // pred_check
      _
    $region11: #{classification_forward.1} parent=1 // pred_check_branch
      %14 = sbr.rel (0) target = $region13
    $region12: #{classification_forward.1} parent=1 // pred_region
      _
    $region13: #{classification_forward.1} parent=1 // pred_fallthru
      _
    %v16 = vld [vmem:[%s0] sm:$0xf]
    %v17 = vld [vmem:[%s1] sm:$0xf]
    %v18 = vld [vmem:[%s1 + $0x4] sm:$0xf]
    %v19 = vld [vmem:[%s1 + $0x8] sm:$0xf]
    %v20 = vld [vmem:[%s1 + $0xc] sm:$0xf]
    %v21 = vld [vmem:[%s2] sm:$0x1]
    %v23 = vlaneseq
    %v24 = vshrl.u32 %v23, 7
    %v25 = vsub.s32 0, %v24
    %v26 = vrot.slane %v21, %v25
    %v32 = vunpack.c.l.b16 %v17
    %v33 = vunpack.c.l.b16 %v18
    %v34 = vunpack.c.l.b16 %v19
    %v35 = vunpack.c.l.b16 %v20
    %v36 = vpack.c.b16 %v33, %v32
    %v37 = vpack.c.b16 %v35, %v34
    %vm40 = vcmask 261120
    %v42 = vsel %vm40, %v16, 0
    %44 = vmatprep.subr.bf16.mxu0 0
    %45 = vmatpush1.bf16.msra.mxu0 %v36
    %46 = vmatprep.subr.bf16.mxu0 0
    %47 = vmatpush1.bf16.msra.mxu0 %v37
    %48 = vmatprep.subr.bf16.mxu0 0
    %49 = vmatpush1.bf16.msra.mxu0 0
    %50 = vmatprep.subr.bf16.mxu0 0
    %51 = vmatpush1.bf16.msra.mxu0 0
    %52 = vmatprep.subr.bf16.mxu0 0
    %53 = vmatpush1.bf16.msra.mxu0 0
    %54 = vmatprep.subr.bf16.mxu0 0
    %55 = vmatpush1.bf16.msra.mxu0 0
    %56 = vmatprep.subr.bf16.mxu0 0
    %57 = vmatpush1.bf16.msra.mxu0 0
    %58 = vmatprep.subr.bf16.mxu0 0
    %59 = vmatpush1.bf16.msra.mxu0 0
    %60 = vmatprep.subr.bf16.mxu0 0
    %61 = vmatpush1.bf16.msra.mxu0 0
    %62 = vmatprep.subr.bf16.mxu0 0
    %63 = vmatpush1.bf16.msra.mxu0 0
    %64 = vmatprep.subr.bf16.mxu0 0
    %65 = vmatpush1.bf16.msra.mxu0 0
    %66 = vmatprep.subr.bf16.mxu0 0
    %67 = vmatpush1.bf16.msra.mxu0 0
    %68 = vmatprep.subr.bf16.mxu0 0
    %69 = vmatpush1.bf16.msra.mxu0 0
    %70 = vmatprep.subr.bf16.mxu0 0
    %71 = vmatpush1.bf16.msra.mxu0 0
    %72 = vmatprep.subr.bf16.mxu0 0
    %73 = vmatpush1.bf16.msra.mxu0 0
    %74 = vmatprep.subr.bf16.mxu0 0
    %75 = vmatpush1.bf16.msra.mxu0 0
    %76 = vmatprep.mubr.bf16.mxu0 0
    %77 = vmatmul.mubr.bf16.gmra.mrb[0].mxu0 %v42
    %v78 = vpop.f32.mrb[0].mxu0
    %v79 = vadd.f32 %v26, %v78
    %v80 = vpop.f32.mrb[0].mxu0
    %v81 = vpop.f32.mrb[0].mxu0
    %v82 = vpop.f32.mrb[0].mxu0
    %83 = vdwg.mxu0
    %84 = vmax.xlane.f32.xlu0 %v79
    %v85 = vpop.xlane.xlu0 %84
    %v86 = vsub.f32 %v79, %v85
    %v87 = vmul.f32 %v86, 1.442695
    %v88 = vpow.pop %v87
    %89 = vadd.xlane.f32.xlu0 %v88
    %v90 = vpop.xlane.xlu0 %89
    %v91 = vlog2.pop %v90
    %v92 = vmul.f32 %v91, 0.6931472
    %v93 = vsub.f32 %v86, %v92
    %94 = vst [vmem:[#allocation2] sm:$0xff] %v93
    // Predicated region
    $region14: #{classification_forward.1} parent=1 // pred_check
      _
    $region15: #{classification_forward.1} parent=1 // pred_check_branch
      %96 = sbr.rel (0) target = $region17
    $region16: #{classification_forward.1} parent=1 // pred_region
      %s98 = ssub.s32 128, 128
      %99 = vsyncadd [#allocation3], %s98
      %s101 = sshll.u32 [#allocation2], 4
      %s102 = int_to_ptr.vmem [resolvable:$true] %s101
      %104 = dma.vmem_to_hbm [thread:$0]  %s102, 128, %s3, [#allocation3]
    $region17: #{classification_forward.1} parent=1 // pred_fallthru
      _
    // Predicated region
    $region18: #{classification_forward.1} parent=1 // pred_check
      _
    $region19: #{classification_forward.1} parent=1 // pred_check_branch
      %106 = sbr.rel (0) target = $region21
    $region20: #{classification_forward.1} parent=1 // pred_region
      %107 = dma.done [#allocation3], 128
    $region21: #{classification_forward.1} parent=1 // pred_fallthru
      _
    %108 = vsyncpa [#allocation3], 1

</llo_original>
